<compile_context>
chip_gen: v5e
topology: v5e:2x2
jax: 0.10.0
libtpu: 0.0.40
codegen_flags: <defaults>
</compile_context>

<pallas_src>
import jax
import jax.numpy as jnp
from jax.experimental import pallas as pl
from jax.experimental.pallas import tpu as pltpu


def _round_up(v, m):
    return (v + m - 1) // m * m


def _vmem_limit_bytes():
    """Generation-aware scoped-VMEM budget (scoped defaults are far below physical)."""
    try:
        kind = jax.devices()[0].device_kind.lower()
    except Exception:
        kind = ""
    if ("v5" in kind) or ("v6" in kind):
        return 100 * 1024 * 1024          # v5e / v6e: 128 MiB physical VMEM
    return 56 * 1024 * 1024               # v7x: 64 MiB physical; unknown: stay safe


def mlp_kernel(x_ref, w1_ref, b1_ref, w2_ref, b2_ref, o_ref, acc_ref):
    # Grid = (row tiles [parallel], c_hid chunks [arbitrary, last]).
    #   x_ref : (TM, C_in)        activation rows (original dtype, cast here)
    #   w1_ref: (C_in, TK)        bf16, lane-padded hidden chunk
    #   b1_ref: (1, TK)           f32
    #   w2_ref: (TK, C_out_p)     bf16
    #   b2_ref: (1, C_out_p)      f32
    #   o_ref : (TM, C_out_p)     lane-dense output tile
    #   acc_ref: (TM, C_out_p)    f32 accumulator scratch (lives across k steps)
    k = pl.program_id(1)

    @pl.when(k == 0)
    def _init():
        acc_ref[...] = jnp.zeros_like(acc_ref)

    x = x_ref[...].astype(w1_ref.dtype)                       # bf16 MXU operands
    h = jnp.dot(x, w1_ref[...], preferred_element_type=jnp.float32)
    h = jnp.maximum(h + b1_ref[...], 0.0)                     # bias + ReLU in f32
    acc_ref[...] += jnp.dot(h.astype(w2_ref.dtype), w2_ref[...],
                            preferred_element_type=jnp.float32)

    @pl.when(k == pl.num_programs(1) - 1)
    def _finalize():
        o_ref[...] = (acc_ref[...] + b2_ref[...]).astype(o_ref.dtype)


def pack_mlp_params(w1, b1, w2, b2, *, compute_dtype=jnp.bfloat16):
    """One-time weight pre-pack (transpose + lane-pad to 128 + cast to bf16).

    w1: [c_hid, c_in], b1: [c_hid]   (PyTorch nn.Linear layout: [out, in])
    w2: [c_out, c_hid], b2: [c_out]
    """
    c_hid, c_in = w1.shape
    c_out = w2.shape[0]
    c_hid_p = _round_up(c_hid, 128)
    c_out_p = _round_up(c_out, 128)
    # Zero padding is semantics-preserving: padded hidden cols see bias 0 and
    # relu(0)=0, and multiply all-zero rows of W2; padded out cols are sliced off.
    w1t = jnp.pad(w1.T.astype(compute_dtype), ((0, 0), (0, c_hid_p - c_hid)))
    b1p = jnp.pad(b1.astype(jnp.float32), (0, c_hid_p - c_hid)).reshape(1, c_hid_p)
    w2t = jnp.pad(w2.T.astype(compute_dtype),
                  ((0, c_hid_p - c_hid), (0, c_out_p - c_out)))
    b2p = jnp.pad(b2.astype(jnp.float32), (0, c_out_p - c_out)).reshape(1, c_out_p)
    return {"w1t": w1t, "b1": b1p, "w2t": w2t, "b2": b2p,
            "c_in": c_in, "c_hid": c_hid, "c_out": c_out}


def my_mlp_forward(x, params, *, row_tile=512, hid_tile=2048):
    """Fused Linear -> ReLU -> Linear (PyTorch `mlp.forward`), pre-packed params.

    x : [..., c_in] -> [..., c_out]
    """
    w1t, b1p, w2t, b2p = params["w1t"], params["b1"], params["w2t"], params["b2"]
    c_in, c_out = params["c_in"], params["c_out"]
    c_hid_p = w1t.shape[1]
    c_out_p = w2t.shape[1]
    assert x.shape[-1] == c_in

    lead_shape = x.shape[:-1]
    x2 = x.reshape(-1, c_in)              # fold all leading dims into rows
    M = x2.shape[0]
    if M == 0:                            # degenerate-batch guard
        return jnp.zeros((*lead_shape, c_out), x.dtype)

    # Row tiling: rounded to 16 (bf16 sublane pack).  Small M still yields >= 2
    # parallel tiles (v7x megacore); large M uses 512-row tiles.  No row padding
    # of x: cdiv grid + partial last block (garbage rows are masked on writeback).
    if M <= 16:
        tm = 16
    elif M <= 2 * row_tile:
        tm = _round_up(pl.cdiv(M, 2), 16)
    else:
        tm = row_tile
    grid_m = pl.cdiv(M, tm)

    # Hidden-dim chunking bounds VMEM independently of layer size (exact math:
    # ReLU is elementwise per hidden unit, so per-chunk h @ W2-chunk accumulates).
    tk = min(c_hid_p, _round_up(hid_tile, 128))
    grid_k = pl.cdiv(c_hid_p, tk)

    wbytes = jnp.dtype(w1t.dtype).itemsize
    xbytes = jnp.dtype(x.dtype).itemsize
    cost = pl.CostEstimate(
        flops=2 * M * c_in * c_hid_p + 2 * M * c_hid_p * c_out_p,
        transcendentals=0,
        bytes_accessed=(M * c_in * xbytes
                        + grid_m * (c_in * c_hid_p + c_hid_p * c_out_p) * wbytes
                        + 4 * (c_hid_p + c_out_p)
                        + M * c_out_p * xbytes),
    )

    out_p = pl.pallas_call(
        mlp_kernel,
        out_shape=jax.ShapeDtypeStruct((M, c_out_p), x.dtype),
        grid_spec=pltpu.PrefetchScalarGridSpec(
            num_scalar_prefetch=0,
            grid=(grid_m, grid_k),
            in_specs=[
                pl.BlockSpec((tm, c_in), lambda i, k: (i, 0)),        # x rows
                pl.BlockSpec((c_in, tk), lambda i, k: (0, k)),        # W1^T chunk
                pl.BlockSpec((1, tk), lambda i, k: (0, k)),           # b1 chunk
                pl.BlockSpec((tk, c_out_p), lambda i, k: (k, 0)),     # W2^T chunk
                pl.BlockSpec((1, c_out_p), lambda i, k: (0, 0)),      # b2
            ],
            out_specs=pl.BlockSpec((tm, c_out_p), lambda i, k: (i, 0)),
            scratch_shapes=[pltpu.VMEM((tm, c_out_p), jnp.float32)],
        ),
        compiler_params=pltpu.CompilerParams(
            dimension_semantics=("parallel", "arbitrary"),
            vmem_limit_bytes=_vmem_limit_bytes(),
        ),
        cost_estimate=cost,
    )(x2, w1t, b1p, w2t, b2p)

    return out_p[:, :c_out].reshape(*lead_shape, c_out)


if __name__ == "__main__":
    # Small shapes consistent with the module: batch=2, nodes/seq=16,
    # c_in=32, c_hid=64, c_out=32.
    B, N, C_IN, C_HID, C_OUT = 2, 16, 32, 64, 32

    key = jax.random.PRNGKey(0)
    k_x, k_w1, k_w2, k_b1, k_b2 = jax.random.split(key, 5)

    x = jax.random.normal(k_x, (B, N, C_IN), dtype=jnp.float32)
    # Kaiming-normal init (relu gain), matching nn.init.kaiming_normal_.
    w1 = jax.random.normal(k_w1, (C_HID, C_IN), dtype=jnp.float32) * jnp.sqrt(2.0 / C_IN)
    w2 = jax.random.normal(k_w2, (C_OUT, C_HID), dtype=jnp.float32) * jnp.sqrt(2.0 / C_HID)
    b1 = jax.random.uniform(k_b1, (C_HID,), dtype=jnp.float32, minval=-0.1, maxval=0.1)
    b2 = jax.random.uniform(k_b2, (C_OUT,), dtype=jnp.float32, minval=-0.1, maxval=0.1)

    # One-time weight pre-pack (done once at init, not per forward).
    params = pack_mlp_params(w1, b1, w2, b2)

    out = my_mlp_forward(x, params)
    out = jax.block_until_ready(out)
    assert out.shape == (B, N, C_OUT)

    # Reference 1: same math with the same bf16 operand rounding (tight check).
    xb = x.reshape(-1, C_IN).astype(jnp.bfloat16)
    h_ref = jnp.maximum(
        jnp.dot(xb, w1.T.astype(jnp.bfloat16), preferred_element_type=jnp.float32) + b1,
        0.0)
    ref_bf16 = (jnp.dot(h_ref.astype(jnp.bfloat16), w2.T.astype(jnp.bfloat16),
                        preferred_element_type=jnp.float32) + b2).reshape(B, N, C_OUT)
    assert jnp.allclose(out, ref_bf16, atol=2e-3, rtol=2e-3)

    # Reference 2: full-f32 PyTorch-equivalent math (loose check, bf16 operands).
    ref_f32 = jnp.maximum(x @ w1.T + b1, 0.0) @ w2.T + b2
    assert jnp.allclose(out, ref_f32, atol=1e-1, rtol=1e-1)

    print("KERNEL_OK")
</pallas_src>

<mosaic_0001>
module attributes {stable_mosaic.version = 11 : i64} {
  func.func @mlp_kernel(%arg0: i32, %arg1: i32, %arg2: memref<16x32xf32, #tpu.memory_space<vmem>>, %arg3: memref<32x128xbf16, #tpu.memory_space<vmem>>, %arg4: memref<1x128xf32, #tpu.memory_space<vmem>>, %arg5: memref<128x128xbf16, #tpu.memory_space<vmem>>, %arg6: memref<1x128xf32, #tpu.memory_space<vmem>>, %arg7: memref<16x128xf32, #tpu.memory_space<vmem>>, %arg8: memref<16x128xf32, #tpu.memory_space<vmem>>) attributes {dimension_semantics = [#tpu.dimension_semantics<parallel>, #tpu.dimension_semantics<arbitrary>], iteration_bounds = array<i64: 2, 1>, scalar_prefetch = 0 : i64, scratch_operands = 1 : i64, tpu.core_type = #tpu.core_type<tc>, window_params = [{transform_indices = @transform_0, window_bounds = array<i64: 16, 32>}, {transform_indices = @transform_1, window_bounds = array<i64: 32, 128>}, {transform_indices = @transform_2, window_bounds = array<i64: 1, 128>}, {transform_indices = @transform_3, window_bounds = array<i64: 128, 128>}, {pipeline_mode = #tpu.pipeline_mode<synchronous>, transform_indices = @transform_4, window_bounds = array<i64: 1, 128>}, {transform_indices = @transform_5, window_bounds = array<i64: 16, 128>}]} {
    %c0_i32 = arith.constant 0 : i32
    %0 = arith.cmpi eq, %arg1, %c0_i32 : i32
    %1 = arith.extui %0 : i1 to i32
    %c0_i32_0 = arith.constant 0 : i32
    %2 = arith.cmpi ne, %1, %c0_i32_0 : i32
    scf.if %2 {
      %cst_16 = arith.constant 0.000000e+00 : f32
      %21 = vector.broadcast %cst_16 : f32 to vector<16x128xf32>
      %c0_17 = arith.constant 0 : index
      %c0_18 = arith.constant 0 : index
      %22 = vector.load %arg8[%c0_17, %c0_18] : memref<16x128xf32, #tpu.memory_space<vmem>>, vector<16x128xf32>
      tpu.vector_store %arg8[%c0_17, %c0_18], %21 {strides = array<i32>} : memref<16x128xf32, #tpu.memory_space<vmem>>, vector<16x128xf32>,
    } else {
    }
    %c0 = arith.constant 0 : index
    %c0_1 = arith.constant 0 : index
    %3 = vector.load %arg2[%c0, %c0_1] : memref<16x32xf32, #tpu.memory_space<vmem>>, vector<16x32xf32>
    %4 = arith.truncf %3 : vector<16x32xf32> to vector<16x32xbf16>
    %c0_2 = arith.constant 0 : index
    %c0_3 = arith.constant 0 : index
    %5 = vector.load %arg3[%c0_2, %c0_3] : memref<32x128xbf16, #tpu.memory_space<vmem>>, vector<32x128xbf16>
    %cst = arith.constant dense<0.000000e+00> : vector<16x128xf32>
    %6 = tpu.matmul %4, %5, %cst {dimension_numbers = #tpu.dot_dimension_numbers<[1], [0], [0], [1], [0, 0, 1, 1], [], []>} : vector<16x32xbf16>, vector<32x128xbf16>, vector<16x128xf32> -> vector<16x128xf32>
    %c0_4 = arith.constant 0 : index
    %c0_5 = arith.constant 0 : index
    %7 = vector.load %arg4[%c0_4, %c0_5] : memref<1x128xf32, #tpu.memory_space<vmem>>, vector<1x128xf32>
    %8 = vector.broadcast %7 : vector<1x128xf32> to vector<16x128xf32>
    %9 = arith.addf %6, %8 : vector<16x128xf32>
    %cst_6 = arith.constant 0.000000e+00 : f32
    %10 = vector.broadcast %cst_6 : f32 to vector<16x128xf32>
    %11 = arith.maximumf %9, %10 : vector<16x128xf32>
    %c0_7 = arith.constant 0 : index
    %c0_8 = arith.constant 0 : index
    %12 = vector.load %arg8[%c0_7, %c0_8] : memref<16x128xf32, #tpu.memory_space<vmem>>, vector<16x128xf32>
    %13 = arith.truncf %11 : vector<16x128xf32> to vector<16x128xbf16>
    %c0_9 = arith.constant 0 : index
    %c0_10 = arith.constant 0 : index
    %14 = vector.load %arg5[%c0_9, %c0_10] : memref<128x128xbf16, #tpu.memory_space<vmem>>, vector<128x128xbf16>
    %cst_11 = arith.constant dense<0.000000e+00> : vector<16x128xf32>
    %15 = tpu.matmul %13, %14, %cst_11 {dimension_numbers = #tpu.dot_dimension_numbers<[1], [0], [0], [1], [0, 0, 1, 1], [], []>} : vector<16x128xbf16>, vector<128x128xbf16>, vector<16x128xf32> -> vector<16x128xf32>
    %16 = arith.addf %12, %15 : vector<16x128xf32>
    %c0_12 = arith.constant 0 : index
    %c0_13 = arith.constant 0 : index
    %17 = vector.load %arg8[%c0_12, %c0_13] : memref<16x128xf32, #tpu.memory_space<vmem>>, vector<16x128xf32>
    tpu.vector_store %arg8[%c0_12, %c0_13], %16 {strides = array<i32>} : memref<16x128xf32, #tpu.memory_space<vmem>>, vector<16x128xf32>,
    %c0_i32_14 = arith.constant 0 : i32
    %18 = arith.cmpi eq, %arg1, %c0_i32_14 : i32
    %19 = arith.extui %18 : i1 to i32
    %c0_i32_15 = arith.constant 0 : i32
    %20 = arith.cmpi ne, %19, %c0_i32_15 : i32
    scf.if %20 {
      %c0_16 = arith.constant 0 : index
      %c0_17 = arith.constant 0 : index
      %21 = vector.load %arg8[%c0_16, %c0_17] : memref<16x128xf32, #tpu.memory_space<vmem>>, vector<16x128xf32>
      %c0_18 = arith.constant 0 : index
      %c0_19 = arith.constant 0 : index
      %22 = vector.load %arg6[%c0_18, %c0_19] : memref<1x128xf32, #tpu.memory_space<vmem>>, vector<1x128xf32>
      %23 = vector.broadcast %22 : vector<1x128xf32> to vector<16x128xf32>
      %24 = arith.addf %21, %23 : vector<16x128xf32>
      %c0_20 = arith.constant 0 : index
      %c0_21 = arith.constant 0 : index
      %25 = vector.load %arg7[%c0_20, %c0_21] : memref<16x128xf32, #tpu.memory_space<vmem>>, vector<16x128xf32>
      tpu.vector_store %arg7[%c0_20, %c0_21], %24 {strides = array<i32>} : memref<16x128xf32, #tpu.memory_space<vmem>>, vector<16x128xf32>,
    } else {
    }
    return
  }
  func.func @transform_0(%arg0: i32, %arg1: i32) -> (i32, i32) {
    %c0_i32 = arith.constant 0 : i32
    %c0_i32_0 = arith.constant 0 : i32
    return %arg0, %c0_i32 : i32, i32
  }
  func.func @transform_1(%arg0: i32, %arg1: i32) -> (i32, i32) {
    %c0_i32 = arith.constant 0 : i32
    %c0_i32_0 = arith.constant 0 : i32
    return %c0_i32, %arg1 : i32, i32
  }
  func.func @transform_2(%arg0: i32, %arg1: i32) -> (i32, i32) {
    %c0_i32 = arith.constant 0 : i32
    %c0_i32_0 = arith.constant 0 : i32
    return %c0_i32, %arg1 : i32, i32
  }
  func.func @transform_3(%arg0: i32, %arg1: i32) -> (i32, i32) {
    %c0_i32 = arith.constant 0 : i32
    %c0_i32_0 = arith.constant 0 : i32
    return %arg1, %c0_i32 : i32, i32
  }
  func.func @transform_4(%arg0: i32, %arg1: i32) -> (i32, i32) {
    %c0_i32 = arith.constant 0 : i32
    %c0_i32_0 = arith.constant 0 : i32
    %c0_i32_1 = arith.constant 0 : i32
    return %c0_i32, %c0_i32_0 : i32, i32
  }
  func.func @transform_5(%arg0: i32, %arg1: i32) -> (i32, i32) {
    %c0_i32 = arith.constant 0 : i32
    %c0_i32_0 = arith.constant 0 : i32
    return %arg0, %c0_i32 : i32, i32
  }
}

</mosaic_0001>

<llo_original>
// kernel: tpu_custom_call.1
$region0: #{tpu_custom_call.1}
  #allocation0 [shape = 'u32[]', space=smem, size = 0x4, offset = 0x4, fixed_abs, tag = 'smem constant byte address 0x4 - core index']
  #allocation1 [shape = 'u32[72,128]{1,0:T(1,128)}', space=vmem, size = 0x9000, scoped, tag = 'internal scratch']
  #allocation2 [shape = 'f32[16,128]{1,0:T(8,128)}', space=vmem, size = 0x2000, scoped, tag = 'scratch operand']
  %s0 = inlined_call_operand.hbm [shape: f32[32,32], index: 0, kind: input, shape index: {}]
  %s1 = inlined_call_operand.hbm [shape: bf16[32,128], index: 1, kind: input, shape index: {}]
  %s2 = inlined_call_operand.vmem [shape: f32[1,128], index: 2, kind: input, shape index: {}]
  %s3 = inlined_call_operand.hbm [shape: bf16[128,128], index: 3, kind: input, shape index: {}]
  %s4 = inlined_call_operand.vmem [shape: f32[1,128], index: 4, kind: input, shape index: {}]
  %s5 = inlined_call_operand.hbm [shape: f32[32,128], index: 5, kind: output, shape index: {}]
  %s6 = sld [smem:[#allocation0]]
  $region73: #{tpu_custom_call.1} parent=0
    _
  %s8 = ssub.s32 1, %s6
  %s9 = scalar_select 0, %s8, %s6
  $region1: #{tpu_custom_call.1} parent=0
    #allocation3 [shape = 'u8[16384]{0}', space=vmem, size = 0x4000, scoped, tag = 'input window, operand 0']
    #allocation4 [shape = 's32[2]{0}', space=sflag, size = 0x8, scoped, tag = 'scoped memory for tpu_custom_call.1']
    #allocation5 [shape = 's32[2]{0}', space=sflag, size = 0x8, scoped, tag = 'scoped memory for tpu_custom_call.1']
    #allocation6 [shape = 'u8[8192]{0}', space=vmem, size = 0x2000, scoped, tag = 'input window, operand 1, single buffered']
    #allocation7 [shape = 's32[1]{0}', space=sflag, size = 0x4, scoped, tag = 'scoped memory for tpu_custom_call.1']
    #allocation8 [shape = 'u8[32768]{0}', space=vmem, size = 0x8000, scoped, tag = 'input window, operand 3, single buffered']
    #allocation9 [shape = 'u8[16384]{0}', space=vmem, size = 0x4000, scoped, tag = 'output window, operand 0']
    %10 = vsyncpa [#allocation4], 0
    %s11 = scalar_lea.sflag [#allocation4], 1
    %12 = vsyncpa %s11, 0
    %13 = vsyncpa [#allocation7], 0
    %14 = vsyncpa [#allocation5], 0
    %s15 = scalar_lea.sflag [#allocation5], 1
    %16 = vsyncpa %s15, 0
    loop: start=0, step=1, limit=4
    $region2: #{tpu_custom_call.1} parent=1 // loop_pre_header
      _
    $region3: #{tpu_custom_call.1} parent=1 // loop_header
      %s18 = sphi 0, %s22
      %p19 = scmp.ge.s32.totalorder %s18, 4
      %s25 = sphi 0, %s37
      %s26 = sphi 0, %s33
      %s27 = sphi 0, %s25
      %s28 = sphi 0, %s26
      %s29 = sphi 0, %s27
      %s30 = sphi 0, %s28
      %s40 = sphi 0, %s42
      %s43 = sphi 0, %s40
      %s44 = sphi 0, %s43
      %s60 = sphi 0, %s44
      %s66 = sphi 0, %s68
      %s69 = sphi 0, %s66
      %s70 = sphi 0, %s69
      %s86 = sphi 0, %s70
      %s92 = sphi 0, %s94
      %s95 = sphi 0, %s92
      %s96 = sphi 0, %s95
      %s112 = sphi 0, %s96
      %s118 = sphi 0, %s120
      %s121 = sphi 0, %s118
      %s122 = sphi 0, %s121
      %s138 = sphi 0, %s122
      %s142 = sphi 0, %s142
      %s144 = sphi 0, %s142
      %s145 = sphi 0, %s144
      %s159 = sphi 0, %s145
      %s165 = sphi 0, %s167
      %s168 = sphi 0, %s165
      %s169 = sphi 0, %s168
      %s185 = sphi 0, %s169
    $region4: #{tpu_custom_call.1} parent=1 // loop_header_branch
      %21 = sbr.rel (%p19) target = $region8
    $region5: #{tpu_custom_call.1} parent=1 // loop_body
      %s23 = ssub.s32 %s18, 1
      %s24 = ssub.s32 %s18, 2
      %s31 = sadd.s32 1, %s26
      %p32 = scmp.ge.s32.totalorder %s31, 1
      %s33 = scalar_select %p32, 0, %s31
      %s34 = sadd.s32 1, %s25
      %s35 = scalar_select %p32, %s34, %s25
      %p36 = scmp.ge.s32.totalorder %s35, 2
      %s37 = scalar_select %p36, 0, %s35
      %s38 = ssub.s32 %s25, %s37
      %p39 = scmp.eq.s32.totalorder %s38, 0
      %s41 = sadd.s32 %s40, 1
      %s42 = scalar_select %p39, %s40, %s41
      %p45 = pneg %p39
      %p46 = scmp.eq.s32.totalorder %s18, 1
      %p47 = por %p45, %p46
      %p48 = scmp.ne.s32.totalorder %s40, %s43
      %p49 = scmp.eq.s32.totalorder %s18, 0
      %p50 = por %p48, %p49
      %p51 = scmp.ne.s32.totalorder %s40, %s43
      %p52 = scmp.eq.s32.totalorder %s23, 1
      %p53 = por %p51, %p52
      %p54 = scmp.ne.s32.totalorder %s43, %s44
      %p55 = scmp.eq.s32.totalorder %s23, 0
      %p56 = por %p54, %p55
      %p57 = scmp.ne.s32.totalorder %s43, %s44
      %p58 = scmp.eq.s32.totalorder %s24, 1
      %p59 = por %p57, %p58
      %p61 = scmp.ne.s32.totalorder %s44, %s60
      %p62 = scmp.eq.s32.totalorder %s24, 0
      %p63 = por %p61, %p62
      %s64 = ssub.s32 %s26, %s33
      %p65 = scmp.eq.s32.totalorder %s64, 0
      %s67 = sadd.s32 %s66, 1
      %s68 = scalar_select %p65, %s66, %s67
      %p71 = pneg %p65
      %p72 = scmp.eq.s32.totalorder %s18, 1
      %p73 = por %p71, %p72
      %p74 = scmp.ne.s32.totalorder %s66, %s69
      %p75 = scmp.eq.s32.totalorder %s18, 0
      %p76 = por %p74, %p75
      %p77 = scmp.ne.s32.totalorder %s66, %s69
      %p78 = scmp.eq.s32.totalorder %s23, 1
      %p79 = por %p77, %p78
      %p80 = scmp.ne.s32.totalorder %s69, %s70
      %p81 = scmp.eq.s32.totalorder %s23, 0
      %p82 = por %p80, %p81
      %p83 = scmp.ne.s32.totalorder %s69, %s70
      %p84 = scmp.eq.s32.totalorder %s24, 1
      %p85 = por %p83, %p84
      %p87 = scmp.ne.s32.totalorder %s70, %s86
      %p88 = scmp.eq.s32.totalorder %s24, 0
      %p89 = por %p87, %p88
      %s90 = ssub.s32 %s26, %s33
      %p91 = scmp.eq.s32.totalorder %s90, 0
      %s93 = sadd.s32 %s92, 1
      %s94 = scalar_select %p91, %s92, %s93
      %p97 = pneg %p91
      %p98 = scmp.eq.s32.totalorder %s18, 1
      %p99 = por %p97, %p98
      %p100 = scmp.ne.s32.totalorder %s92, %s95
      %p101 = scmp.eq.s32.totalorder %s18, 0
      %p102 = por %p100, %p101
      %p103 = scmp.ne.s32.totalorder %s92, %s95
      %p104 = scmp.eq.s32.totalorder %s23, 1
      %p105 = por %p103, %p104
      %p106 = scmp.ne.s32.totalorder %s95, %s96
      %p107 = scmp.eq.s32.totalorder %s23, 0
      %p108 = por %p106, %p107
      %p109 = scmp.ne.s32.totalorder %s95, %s96
      %p110 = scmp.eq.s32.totalorder %s24, 1
      %p111 = por %p109, %p110
      %p113 = scmp.ne.s32.totalorder %s96, %s112
      %p114 = scmp.eq.s32.totalorder %s24, 0
      %p115 = por %p113, %p114
      %s116 = ssub.s32 %s26, %s33
      %p117 = scmp.eq.s32.totalorder %s116, 0
      %s119 = sadd.s32 %s118, 1
      %s120 = scalar_select %p117, %s118, %s119
      %p123 = pneg %p117
      %p124 = scmp.eq.s32.totalorder %s18, 1
      %p125 = por %p123, %p124
      %p126 = scmp.ne.s32.totalorder %s118, %s121
      %p127 = scmp.eq.s32.totalorder %s18, 0
      %p128 = por %p126, %p127
      %p129 = scmp.ne.s32.totalorder %s118, %s121
      %p130 = scmp.eq.s32.totalorder %s23, 1
      %p131 = por %p129, %p130
      %p132 = scmp.ne.s32.totalorder %s121, %s122
      %p133 = scmp.eq.s32.totalorder %s23, 0
      %p134 = por %p132, %p133
      %p135 = scmp.ne.s32.totalorder %s121, %s122
      %p136 = scmp.eq.s32.totalorder %s24, 1
      %p137 = por %p135, %p136
      %p139 = scmp.ne.s32.totalorder %s122, %s138
      %p140 = scmp.eq.s32.totalorder %s24, 0
      %p141 = por %p139, %p140
      %s143 = sadd.s32 %s142, 1
      %p146 = scmp.eq.s32.totalorder %s18, 1
      %p147 = scmp.ne.s32.totalorder %s142, %s144
      %p148 = scmp.eq.s32.totalorder %s18, 0
      %p149 = por %p147, %p148
      %p150 = scmp.ne.s32.totalorder %s142, %s144
      %p151 = scmp.eq.s32.totalorder %s23, 1
      %p152 = por %p150, %p151
      %p153 = scmp.ne.s32.totalorder %s144, %s145
      %p154 = scmp.eq.s32.totalorder %s23, 0
      %p155 = por %p153, %p154
      %p156 = scmp.ne.s32.totalorder %s144, %s145
      %p157 = scmp.eq.s32.totalorder %s24, 1
      %p158 = por %p156, %p157
      %p160 = scmp.ne.s32.totalorder %s145, %s159
      %p161 = scmp.eq.s32.totalorder %s24, 0
      %p162 = por %p160, %p161
      %s163 = ssub.s32 %s25, %s37
      %p164 = scmp.eq.s32.totalorder %s163, 0
      %s166 = sadd.s32 %s165, 1
      %s167 = scalar_select %p164, %s165, %s166
      %p170 = pneg %p164
      %p171 = scmp.eq.s32.totalorder %s18, 1
      %p172 = por %p170, %p171
      %p173 = scmp.ne.s32.totalorder %s165, %s168
      %p174 = scmp.eq.s32.totalorder %s18, 0
      %p175 = por %p173, %p174
      %p176 = scmp.ne.s32.totalorder %s165, %s168
      %p177 = scmp.eq.s32.totalorder %s23, 1
      %p178 = por %p176, %p177
      %p179 = scmp.ne.s32.totalorder %s168, %s169
      %p180 = scmp.eq.s32.totalorder %s23, 0
      %p181 = por %p179, %p180
      %p182 = scmp.ne.s32.totalorder %s168, %s169
      %p183 = scmp.eq.s32.totalorder %s24, 1
      %p184 = por %p182, %p183
      %p186 = scmp.ne.s32.totalorder %s169, %s185
      %p187 = scmp.eq.s32.totalorder %s24, 0
      %p188 = por %p186, %p187
      %p189 = scmp.le.s32.totalorder 1, %s18
      %p190 = scmp.lt.s32.totalorder %s18, 3
      %p191 = pnand %p189, %p190
      %p192 = pneg %p191
      // Predicated region
      $region9: #{tpu_custom_call.1} parent=5 // pred_check
        _
      $region10: #{tpu_custom_call.1} parent=5 // pred_check_branch
        %194 = sbr.rel (%p191) target = $region12
      $region11: #{tpu_custom_call.1} parent=5 // pred_region
        %s195 = ssub.s32 %s18, 1
        // Predicated region
        $region13: #{tpu_custom_call.1} parent=11 // pred_check
          %p196 = pneg %p82
        $region14: #{tpu_custom_call.1} parent=11 // pred_check_branch
          %198 = sbr.rel (%p196) target = $region16
        $region15: #{tpu_custom_call.1} parent=11 // pred_region
          %200 = vsyncadd [#allocation7], 0
          %s201 = smul.addr %s28, 4
          %s202 = scalar_lea.hbm %s1, %s201
          %s203 = sshll.u32 %s202, 4
          %s204 = int_to_ptr.hbm [resolvable:$true] %s203
          %s205 = sshll.u32 [#allocation6], 4
          %s206 = int_to_ptr.vmem [resolvable:$true] %s205
          %211 = dma.hbm_to_vmem [thread:$0]  %s204, 256, %s206, [#allocation7], 64, 64, 4
        $region16: #{tpu_custom_call.1} parent=11 // pred_fallthru
          _
        // Predicated region
        $region17: #{tpu_custom_call.1} parent=11 // pred_check
          %p212 = pneg %p108
        $region18: #{tpu_custom_call.1} parent=11 // pred_check_branch
          %214 = sbr.rel (%p212) target = $region20
        $region19: #{tpu_custom_call.1} parent=11 // pred_region
          %p215 = scmp.lt.s32.totalorder %s28, 0
          %s216 = scalar_select %p215, %s28, 0
          %s217 = scalar_lea.vmem %s2, %s216
        $region20: #{tpu_custom_call.1} parent=11 // pred_fallthru
          _
        // Predicated region
        $region21: #{tpu_custom_call.1} parent=11 // pred_check
          %p218 = pneg %p134
        $region22: #{tpu_custom_call.1} parent=11 // pred_check_branch
          %220 = sbr.rel (%p218) target = $region24
        $region23: #{tpu_custom_call.1} parent=11 // pred_region
          %s221 = smul.u32 16, %s28
          %223 = vsyncadd [#allocation7], 0
          %s224 = smul.addr %s221, 4
          %s225 = scalar_lea.hbm %s3, %s224
          %s226 = sshll.u32 %s225, 4
          %s227 = int_to_ptr.hbm [resolvable:$true] %s226
          %s228 = sshll.u32 [#allocation8], 4
          %s229 = int_to_ptr.vmem [resolvable:$true] %s228
          %234 = dma.hbm_to_vmem [thread:$0]  %s227, 1024, %s229, [#allocation7], 64, 64, 4
        $region24: #{tpu_custom_call.1} parent=11 // pred_fallthru
          _
        // Predicated region
        $region25: #{tpu_custom_call.1} parent=11 // pred_check
          %p235 = pneg %p155
        $region26: #{tpu_custom_call.1} parent=11 // pred_check_branch
          %237 = sbr.rel (%p235) target = $region28
        $region27: #{tpu_custom_call.1} parent=11 // pred_region
          _
        $region28: #{tpu_custom_call.1} parent=11 // pred_fallthru
          _
      $region12: #{tpu_custom_call.1} parent=5 // pred_fallthru
        _
      %p238 = scmp.lt.s32.totalorder %s18, 2
      // Predicated region
      $region29: #{tpu_custom_call.1} parent=5 // pred_check
        %p239 = pneg %p238
      $region30: #{tpu_custom_call.1} parent=5 // pred_check_branch
        %241 = sbr.rel (%p239) target = $region32
      $region31: #{tpu_custom_call.1} parent=5 // pred_region
        // Predicated region
        $region33: #{tpu_custom_call.1} parent=31 // pred_check
          %p242 = pneg %p50
        $region34: #{tpu_custom_call.1} parent=31 // pred_check_branch
          %244 = sbr.rel (%p242) target = $region36
        $region35: #{tpu_custom_call.1} parent=31 // pred_region
          %s245 = sand.u32 %s40, 1
          %s246 = scalar_lea.sflag [#allocation4], %s245
          %s247 = sand.u32 %s40, 1
          %s248 = smul.addr %s247, 16
          %s249 = scalar_lea.vmem [#allocation3], %s248
          %s250 = smul.u32 2, %s25
          %252 = vsyncadd %s246, 0
          %s253 = smul.addr %s250, 8
          %s254 = scalar_lea.hbm %s0, %s253
          %s255 = sshll.u32 %s254, 4
          %s256 = int_to_ptr.hbm [resolvable:$true] %s255
          %s257 = sshll.u32 %s249, 4
          %s258 = int_to_ptr.vmem [resolvable:$true] %s257
          %263 = dma.hbm_to_vmem [thread:$0]  %s256, 256, %s258, %s246, 128, 128, 8
        $region36: #{tpu_custom_call.1} parent=31 // pred_fallthru
          _
      $region32: #{tpu_custom_call.1} parent=5 // pred_fallthru
        _
      %p264 = scmp.le.s32.totalorder 1, %s18
      %p265 = scmp.lt.s32.totalorder %s18, 3
      %p266 = pnand %p264, %p265
      %p267 = pneg %p266
      // Predicated region
      $region37: #{tpu_custom_call.1} parent=5 // pred_check
        _
      $region38: #{tpu_custom_call.1} parent=5 // pred_check_branch
        %269 = sbr.rel (%p266) target = $region40
      $region39: #{tpu_custom_call.1} parent=5 // pred_region
        %s270 = ssub.s32 %s18, 1
        %s271 = sand.u32 %s43, 1
        %s272 = scalar_lea.sflag [#allocation4], %s271
        %s273 = sand.u32 %s43, 1
        %s274 = smul.addr %s273, 16
        %s275 = scalar_lea.vmem [#allocation3], %s274
        // Predicated region
        $region41: #{tpu_custom_call.1} parent=39 // pred_check
          %p276 = pneg %p56
        $region42: #{tpu_custom_call.1} parent=39 // pred_check_branch
          %278 = sbr.rel (%p276) target = $region44
        $region43: #{tpu_custom_call.1} parent=39 // pred_region
          %280 = dma.done %s272, 256
        $region44: #{tpu_custom_call.1} parent=39 // pred_fallthru
          _
        // Predicated region
        $region45: #{tpu_custom_call.1} parent=39 // pred_check
          %p281 = pneg %p82
        $region46: #{tpu_custom_call.1} parent=39 // pred_check_branch
          %283 = sbr.rel (%p281) target = $region48
        $region47: #{tpu_custom_call.1} parent=39 // pred_region
          %285 = dma.done [#allocation7], 256
        $region48: #{tpu_custom_call.1} parent=39 // pred_fallthru
          _
        // Predicated region
        $region49: #{tpu_custom_call.1} parent=39 // pred_check
          %p286 = pneg %p134
        $region50: #{tpu_custom_call.1} parent=39 // pred_check_branch
          %288 = sbr.rel (%p286) target = $region52
        $region51: #{tpu_custom_call.1} parent=39 // pred_region
          %290 = dma.done [#allocation7], 1024
        $region52: #{tpu_custom_call.1} parent=39 // pred_fallthru
          _
        %s291 = sand.u32 %s43, 1
        %s292 = scalar_lea.sflag [#allocation4], %s291
        %s293 = sand.u32 %s43, 1
        %s294 = smul.addr %s293, 16
        %s295 = scalar_lea.vmem [#allocation3], %s294
        %p296 = pneg %p56
        %p297 = pneg %p53
        %p298 = pneg %p82
        %p299 = pneg %p79
        %p300 = scmp.lt.s32.totalorder %s28, 0
        %s301 = scalar_select %p300, %s28, 0
        %s302 = scalar_lea.vmem %s2, %s301
        %p303 = pneg %p108
        %p304 = pneg %p105
        %p305 = pneg %p134
        %p306 = pneg %p131
        %p307 = pneg %p155
        %p308 = pneg %p152
        %p309 = pneg %p181
        %p310 = pneg %p178
        %s311 = sand.u32 %s168, 1
        %s312 = scalar_lea.sflag [#allocation5], %s311
        %s313 = sand.u32 %s168, 1
        %s314 = smul.addr %s313, 16
        %s315 = scalar_lea.vmem [#allocation9], %s314
        %s316 = smul.u32 2, %s27
        %p317 = scmp.lt.s32.totalorder %s28, 0
        %s318 = scalar_select %p317, %s28, 0
        %s319 = scalar_lea.vmem %s2, %s318
        %s320 = smul.u32 16, %s28
        %s321 = smul.u32 2, %s27
        %p323 = scmp.eq.s32.totalorder %s28, 0
        // Predicated region
        $region53: #{tpu_custom_call.1} parent=39 // pred_check
          %p324 = pneg %p323
        $region54: #{tpu_custom_call.1} parent=39 // pred_check_branch
          %326 = sbr.rel (%p324) target = $region56
        $region55: #{tpu_custom_call.1} parent=39 // pred_region
          %327 = vst [vmem:[#allocation2] sm:$0xff] 0.0
          %328 = vst [vmem:[#allocation2 + $0x8] sm:$0xff] 0.0
        $region56: #{tpu_custom_call.1} parent=39 // pred_fallthru
          _
        %v329 = vld [vmem:[%s275] sm:$0xff]
        %v330 = vld [vmem:[%s275 + $0x8] sm:$0xff]
        %v331 = vpack.c.bf16 %v330, %v329
        %v332 = vld [vmem:[#allocation6] sm:$0xf]
        %v333 = vld [vmem:[#allocation6 + $0x4] sm:$0xf]
        %v334 = vld [vmem:[#allocation6 + $0x8] sm:$0xf]
        %v335 = vld [vmem:[#allocation6 + $0xc] sm:$0xf]
        %v336 = vld [vmem:[%s319] sm:$0x1]
        %v338 = vperm.slane %v336, 0
        %v344 = vunpack.c.l.b16 %v332
        %v345 = vunpack.c.l.b16 %v333
        %v346 = vunpack.c.l.b16 %v334
        %v347 = vunpack.c.l.b16 %v335
        %v348 = vpack.c.b16 %v345, %v344
        %v349 = vpack.c.b16 %v347, %v346
        %vm352 = vcmask 261120
        %v354 = vsel %vm352, %v331, 0
        %356 = vmatpush.bf16.msra.mxu0 0
        %357 = vmatpush.bf16.msra.mxu0 0
        %358 = vmatpush.bf16.msra.mxu0 0
        %359 = vmatpush.bf16.msra.mxu0 0
        %360 = vmatpush.bf16.msra.mxu0 0
        %361 = vmatpush.bf16.msra.mxu0 0
        %362 = vmatpush.bf16.msra.mxu0 %v349
        %363 = vmatpush.bf16.msra.mxu0 %v348
        %364 = vmatmul.bf16.gmra.mxu0 %v354
        %v365 = vpop.f32.mrf.mxu0
        %v366 = vadd.f32 %v338, %v365
        %v367 = vpop.f32.mrf.mxu0
        %v368 = vadd.f32 %v338, %v367
        %369 = vdwg.mxu0
        %v370 = vmax.f32 %v366, 0.0
        %v371 = vmax.f32 %v368, 0.0
        %v372 = vld [vmem:[#allocation2] sm:$0xff]
        %v373 = vld [vmem:[#allocation2 + $0x8] sm:$0xff]
        %v374 = vpack.c.bf16 %v371, %v370
        %v375 = vld [vmem:[#allocation8] sm:$0xf]
        %v376 = vld [vmem:[#allocation8 + $0x4] sm:$0xf]
        %v377 = vld [vmem:[#allocation8 + $0x8] sm:$0xf]
        %v378 = vld [vmem:[#allocation8 + $0xc] sm:$0xf]
        %v379 = vld [vmem:[#allocation8 + $0x10] sm:$0xf]
        %v380 = vld [vmem:[#allocation8 + $0x14] sm:$0xf]
        %v381 = vld [vmem:[#allocation8 + $0x18] sm:$0xf]
        %v382 = vld [vmem:[#allocation8 + $0x1c] sm:$0xf]
        %v383 = vld [vmem:[#allocation8 + $0x20] sm:$0xf]
        %v384 = vld [vmem:[#allocation8 + $0x24] sm:$0xf]
        %v385 = vld [vmem:[#allocation8 + $0x28] sm:$0xf]
        %v386 = vld [vmem:[#allocation8 + $0x2c] sm:$0xf]
        %v387 = vld [vmem:[#allocation8 + $0x30] sm:$0xf]
        %v388 = vld [vmem:[#allocation8 + $0x34] sm:$0xf]
        %v389 = vld [vmem:[#allocation8 + $0x38] sm:$0xf]
        %v390 = vld [vmem:[#allocation8 + $0x3c] sm:$0xf]
        %v407 = vunpack.c.l.b16 %v375
        %v408 = vunpack.c.l.b16 %v376
        %v409 = vunpack.c.l.b16 %v377
        %v410 = vunpack.c.l.b16 %v378
        %v411 = vunpack.c.l.b16 %v379
        %v412 = vunpack.c.l.b16 %v380
        %v413 = vunpack.c.l.b16 %v381
        %v414 = vunpack.c.l.b16 %v382
        %v415 = vunpack.c.l.b16 %v383
        %v416 = vunpack.c.l.b16 %v384
        %v417 = vunpack.c.l.b16 %v385
        %v418 = vunpack.c.l.b16 %v386
        %v419 = vunpack.c.l.b16 %v387
        %v420 = vunpack.c.l.b16 %v388
        %v421 = vunpack.c.l.b16 %v389
        %v422 = vunpack.c.l.b16 %v390
        %v423 = vpack.c.b16 %v408, %v407
        %v424 = vpack.c.b16 %v410, %v409
        %v425 = vpack.c.b16 %v412, %v411
        %v426 = vpack.c.b16 %v414, %v413
        %v427 = vpack.c.b16 %v416, %v415
        %v428 = vpack.c.b16 %v418, %v417
        %v429 = vpack.c.b16 %v420, %v419
        %v430 = vpack.c.b16 %v422, %v421
        %439 = vmatpush.bf16.msra.mxu0 %v430
        %440 = vmatpush.bf16.msra.mxu0 %v429
        %441 = vmatpush.bf16.msra.mxu0 %v428
        %442 = vmatpush.bf16.msra.mxu0 %v427
        %443 = vmatpush.bf16.msra.mxu0 %v426
        %444 = vmatpush.bf16.msra.mxu0 %v425
        %445 = vmatpush.bf16.msra.mxu0 %v424
        %446 = vmatpush.bf16.msra.mxu0 %v423
        %447 = vmatmul.bf16.gmra.mxu0 %v374
        %v448 = vpop.f32.mrf.mxu0
        %v449 = vadd.f32 0.0, %v448
        %v450 = vpop.f32.mrf.mxu0
        %v451 = vadd.f32 0.0, %v450
        %452 = vdwg.mxu0
        %v453 = vadd.f32 %v372, %v449
        %v454 = vadd.f32 %v373, %v451
        %455 = vst [vmem:[#allocation2] sm:$0xff] %v453
        %456 = vst [vmem:[#allocation2 + $0x8] sm:$0xff] %v454
        // Predicated region
        $region57: #{tpu_custom_call.1} parent=39 // pred_check
          %p457 = pneg %p323
        $region58: #{tpu_custom_call.1} parent=39 // pred_check_branch
          %459 = sbr.rel (%p457) target = $region60
        $region59: #{tpu_custom_call.1} parent=39 // pred_region
          %v460 = vld [vmem:[#allocation2] sm:$0xff]
          %v461 = vld [vmem:[#allocation2 + $0x8] sm:$0xff]
          %v462 = vld [vmem:[%s4] sm:$0x1]
          %v464 = vperm.slane %v462, 0
          %v466 = vadd.f32 %v460, %v464
          %v467 = vadd.f32 %v461, %v464
          %468 = vst [vmem:[%s315] sm:$0xff] %v466
          %469 = vst [vmem:[%s315 + $0x8] sm:$0xff] %v467
        $region60: #{tpu_custom_call.1} parent=39 // pred_fallthru
          _
        %s470 = sand.u32 %s168, 1
        %s471 = scalar_lea.sflag [#allocation5], %s470
        %s472 = sand.u32 %s168, 1
        %s473 = smul.addr %s472, 16
        %s474 = scalar_lea.vmem [#allocation9], %s473
        // Predicated region
        $region61: #{tpu_custom_call.1} parent=39 // pred_check
          %p475 = pneg %p178
        $region62: #{tpu_custom_call.1} parent=39 // pred_check_branch
          %477 = sbr.rel (%p475) target = $region64
        $region63: #{tpu_custom_call.1} parent=39 // pred_region
          %s478 = smul.u32 2, %s27
          %480 = vsyncadd %s471, 0
          %s481 = smul.addr %s478, 8
          %s482 = scalar_lea.hbm %s5, %s481
          %s483 = sshll.u32 %s474, 4
          %s484 = int_to_ptr.vmem [resolvable:$true] %s483
          %s485 = sshll.u32 %s482, 4
          %s486 = int_to_ptr.hbm [resolvable:$true] %s485
          %491 = dma.vmem_to_hbm [thread:$0]  %s484, 256, %s486, %s471, 128, 128, 8
        $region64: #{tpu_custom_call.1} parent=39 // pred_fallthru
          _
      $region40: #{tpu_custom_call.1} parent=5 // pred_fallthru
        _
      %p492 = scmp.le.s32.totalorder 2, %s18
      // Predicated region
      $region65: #{tpu_custom_call.1} parent=5 // pred_check
        %p493 = pneg %p492
      $region66: #{tpu_custom_call.1} parent=5 // pred_check_branch
        %495 = sbr.rel (%p493) target = $region68
      $region67: #{tpu_custom_call.1} parent=5 // pred_region
        %s496 = ssub.s32 %s18, 2
        // Predicated region
        $region69: #{tpu_custom_call.1} parent=67 // pred_check
          %p497 = pneg %p184
        $region70: #{tpu_custom_call.1} parent=67 // pred_check_branch
          %499 = sbr.rel (%p497) target = $region72
        $region71: #{tpu_custom_call.1} parent=67 // pred_region
          %s500 = sand.u32 %s169, 1
          %s501 = scalar_lea.sflag [#allocation5], %s500
          %s502 = sand.u32 %s169, 1
          %s503 = smul.addr %s502, 16
          %s504 = scalar_lea.vmem [#allocation9], %s503
          %506 = dma.done %s501, 256
        $region72: #{tpu_custom_call.1} parent=67 // pred_fallthru
          _
      $region68: #{tpu_custom_call.1} parent=5 // pred_fallthru
        _
    $region6: #{tpu_custom_call.1} parent=1 // loop_footer
      %s22 = sadd.s32 1, %s18
    $region7: #{tpu_custom_call.1} parent=1 // loop_footer_branch
      %17 = sbr.rel target = $region3
    $region8: #{tpu_custom_call.1} parent=1 // loop_exit
      _
    %507 = vsyncpa [#allocation4], 1
    %s508 = scalar_lea.sflag [#allocation4], 1
    %509 = vsyncpa %s508, 1
    %510 = vsyncpa [#allocation7], 1
    %511 = vsyncpa [#allocation5], 1
    %s512 = scalar_lea.sflag [#allocation5], 1
    %513 = vsyncpa %s512, 1

</llo_original>
